<compile_context>
chip_gen: v5e
topology: v5e:2x2
jax: 0.10.0
libtpu: 0.0.40
codegen_flags: <defaults>
</compile_context>

<pallas_src>
import math

import jax
import jax.numpy as jnp
import numpy as np
from jax import lax
from jax.experimental import pallas as pl
from jax.experimental.pallas import tpu as pltpu

# ---- model config (small synthetic shapes, consistent with the module) ----
B = 2          # batch
S = 8          # sequence length
H = 32         # hidden size
NH = 4         # num attention heads
HD = H // NH   # head size
I = 64         # intermediate size
EPS = 1e-12    # layer_norm_eps (ALBERT default)
BS = B * S     # flattened rows processed in one kernel invocation

# ---- constants-slab layout: one (8 + BS, 128) f32 tile, a single DMA ----
_ROW_BQKV, _ROW_BO, _ROW_LN1G, _ROW_LN1B = 0, 1, 2, 3
_ROW_BF, _ROW_BFO, _ROW_LN2G, _ROW_LN2B = 4, 5, 6, 7
_ROW_MASK = 8                      # rows 8 .. 8+BS-1, cols 0..BS-1 hold the mask bias
_CONST_ROWS = _ROW_MASK + BS       # 24 (multiple of 8)
_CONST_LANES = 128


def _layernorm(x, gamma, beta, eps):
    # x: (N, D), gamma/beta: (1, D); normalize over last dim (biased variance, like torch)
    mean = jnp.mean(x, axis=-1, keepdims=True)
    var = jnp.mean((x - mean) ** 2, axis=-1, keepdims=True)
    inv = lax.rsqrt(var + eps)
    return (x - mean) * inv * gamma + beta


def _gelu_erf(x):
    # matches torch 'gelu': x * 0.5 * (1 + erf(x / sqrt(2)))
    return x * 0.5 * (1.0 + lax.erf(x / math.sqrt(2.0)))


def albert_layer_kernel(x_ref, wqkv_ref, wo_ref, wf_ref, wfo_ref, const_ref, out_ref):
    x = x_ref[...]                                                     # (BS, H) f32

    # --- unpack the constants slab with static (free) slices ---
    bqkv  = const_ref[_ROW_BQKV:_ROW_BQKV + 1, 0:3 * H]                # (1, 3H), Q-part pre-scaled
    bo    = const_ref[_ROW_BO:_ROW_BO + 1, 0:H]
    ln1_g = const_ref[_ROW_LN1G:_ROW_LN1G + 1, 0:H]
    ln1_b = const_ref[_ROW_LN1B:_ROW_LN1B + 1, 0:H]
    bf    = const_ref[_ROW_BF:_ROW_BF + 1, 0:I]
    bfo   = const_ref[_ROW_BFO:_ROW_BFO + 1, 0:H]
    ln2_g = const_ref[_ROW_LN2G:_ROW_LN2G + 1, 0:H]
    ln2_b = const_ref[_ROW_LN2B:_ROW_LN2B + 1, 0:H]
    mask_bias = const_ref[_ROW_MASK:_ROW_MASK + BS, 0:BS]              # (BS, BS) 0 / -1e30

    # --- fused QKV projection: one (BS,H) @ (H,3H) matmul on the MXU ---
    # (1/sqrt(HD) attention scale is folded into the Q columns / Q bias.)
    qkv = jnp.dot(x, wqkv_ref[...], preferred_element_type=jnp.float32) + bqkv

    # --- per-head scaled-dot-product attention ---
    ctx_heads = []
    for h in range(NH):                                                # static unroll
        q_h = qkv[:, h * HD:(h + 1) * HD]                              # (BS, HD), already scaled
        k_h = qkv[:, H + h * HD: H + (h + 1) * HD]                     # (BS, HD)
        v_h = qkv[:, 2 * H + h * HD: 2 * H + (h + 1) * HD]             # (BS, HD)

        # q_h @ k_h^T via dot_general (contract last dims, no explicit transpose)
        s = lax.dot_general(q_h, k_h, (((1,), (1,)), ((), ())),
                            preferred_element_type=jnp.float32)        # (BS, BS)
        s = s + mask_bias                                              # block-diagonal additive mask
        s = s - jnp.max(s, axis=-1, keepdims=True)
        p = jnp.exp(s)
        p = p / jnp.sum(p, axis=-1, keepdims=True)                     # exact softmax (torch parity)
        ctx_heads.append(jnp.dot(p, v_h, preferred_element_type=jnp.float32))  # (BS, HD)

    # --- single output projection: concat heads -> one (BS,H)@(H,H) matmul ---
    ctx = jnp.concatenate(ctx_heads, axis=-1)                          # (BS, H)
    proj = jnp.dot(ctx, wo_ref[...], preferred_element_type=jnp.float32) + bo

    # --- attention residual + LayerNorm ---
    attn_out = _layernorm(x + proj, ln1_g, ln1_b, EPS)                 # (BS, H)

    # --- FFN: Linear -> gelu(erf) -> Linear, residual + LayerNorm ---
    ffn = jnp.dot(attn_out, wf_ref[...], preferred_element_type=jnp.float32) + bf   # (BS, I)
    ffn = _gelu_erf(ffn)
    ffn = jnp.dot(ffn, wfo_ref[...], preferred_element_type=jnp.float32) + bfo      # (BS, H)
    out = _layernorm(ffn + attn_out, ln2_g, ln2_b, EPS)

    out_ref[...] = out.astype(out_ref.dtype)


def pack_params(p):
    """One-time (outside-jit) packing of weights/biases for the kernel."""
    scale = 1.0 / math.sqrt(HD)
    # fused QKV weights, attention scale folded into the Q columns
    wqkv = jnp.concatenate([p["wq"] * scale, p["wk"], p["wv"]], axis=1)       # (H, 3H)

    slab = np.zeros((_CONST_ROWS, _CONST_LANES), np.float32)
    slab[_ROW_BQKV, :3 * H] = np.concatenate(
        [np.asarray(p["bq"])[0] * scale, np.asarray(p["bk"])[0], np.asarray(p["bv"])[0]])
    slab[_ROW_BO, :H] = np.asarray(p["bo"])[0]
    slab[_ROW_LN1G, :H] = np.asarray(p["ln1_g"])[0]
    slab[_ROW_LN1B, :H] = np.asarray(p["ln1_b"])[0]
    slab[_ROW_BF, :I] = np.asarray(p["bf"])[0]
    slab[_ROW_BFO, :H] = np.asarray(p["bfo"])[0]
    slab[_ROW_LN2G, :H] = np.asarray(p["ln2_g"])[0]
    slab[_ROW_LN2B, :H] = np.asarray(p["ln2_b"])[0]
    # precomputed block-diagonal additive mask (rows from different batches -> -1e30)
    rb = np.arange(BS)[:, None] // S
    cb = np.arange(BS)[None, :] // S
    slab[_ROW_MASK:_ROW_MASK + BS, :BS] = np.where(rb == cb, 0.0, -1e30).astype(np.float32)

    return {"wqkv": wqkv, "wo": p["wo"], "wf": p["wf"], "wfo": p["wfo"],
            "consts": jnp.asarray(slab)}


@jax.jit
def albert_layer(x, packed):
    """x: (B, S, H) float32. packed: output of pack_params()."""
    x2d = x.reshape(BS, H)
    vmem = pl.BlockSpec(memory_space=pltpu.MemorySpace.VMEM)           # whole array in VMEM
    out2d = pl.pallas_call(
        albert_layer_kernel,
        out_shape=jax.ShapeDtypeStruct((BS, H), jnp.float32),
        in_specs=[vmem] * 6,
        out_specs=vmem,
    )(x2d, packed["wqkv"], packed["wo"], packed["wf"], packed["wfo"], packed["consts"])
    return out2d.reshape(B, S, H)


# ---- pure-JAX reference for sanity checking ----
def albert_layer_ref(x, p):
    def ln(v, g, b):
        m = jnp.mean(v, axis=-1, keepdims=True)
        var = jnp.mean((v - m) ** 2, axis=-1, keepdims=True)
        return (v - m) / jnp.sqrt(var + EPS) * g + b

    q = x @ p["wq"] + p["bq"]
    k = x @ p["wk"] + p["bk"]
    v = x @ p["wv"] + p["bv"]
    qh = q.reshape(B, S, NH, HD).transpose(0, 2, 1, 3)
    kh = k.reshape(B, S, NH, HD).transpose(0, 2, 1, 3)
    vh = v.reshape(B, S, NH, HD).transpose(0, 2, 1, 3)
    scores = jnp.einsum("bhqd,bhkd->bhqk", qh, kh) / math.sqrt(HD)
    probs = jax.nn.softmax(scores, axis=-1)
    ctx = jnp.einsum("bhqk,bhkd->bhqd", probs, vh).transpose(0, 2, 1, 3).reshape(B, S, H)
    proj = ctx @ p["wo"] + p["bo"]
    attn_out = ln(x + proj, p["ln1_g"], p["ln1_b"])
    ffn = attn_out @ p["wf"] + p["bf"]
    ffn = ffn * 0.5 * (1.0 + lax.erf(ffn / math.sqrt(2.0)))
    ffn = ffn @ p["wfo"] + p["bfo"]
    return ln(ffn + attn_out, p["ln2_g"], p["ln2_b"])


def make_params(key):
    ks = jax.random.split(key, 8)
    s = 0.05
    params = {
        "wq": jax.random.normal(ks[0], (H, H), jnp.float32) * s,
        "bq": jnp.zeros((1, H), jnp.float32),
        "wk": jax.random.normal(ks[1], (H, H), jnp.float32) * s,
        "bk": jnp.zeros((1, H), jnp.float32),
        "wv": jax.random.normal(ks[2], (H, H), jnp.float32) * s,
        "bv": jnp.zeros((1, H), jnp.float32),
        "wo": jax.random.normal(ks[3], (H, H), jnp.float32) * s,
        "bo": jax.random.normal(ks[4], (1, H), jnp.float32) * s,
        "ln1_g": jnp.ones((1, H), jnp.float32),
        "ln1_b": jnp.zeros((1, H), jnp.float32),
        "wf": jax.random.normal(ks[5], (H, I), jnp.float32) * s,
        "bf": jax.random.normal(ks[6], (1, I), jnp.float32) * s,
        "wfo": jax.random.normal(ks[7], (I, H), jnp.float32) * s,
        "bfo": jnp.zeros((1, H), jnp.float32),
        "ln2_g": jnp.ones((1, H), jnp.float32),
        "ln2_b": jnp.zeros((1, H), jnp.float32),
    }
    return params


if __name__ == "__main__":
    key = jax.random.PRNGKey(0)
    k_x, k_p = jax.random.split(key)
    x = jax.random.normal(k_x, (B, S, H), jnp.float32)
    params = make_params(k_p)
    packed = pack_params(params)          # one-time packing, outside the jitted path

    out = albert_layer(x, packed)
    out = jax.block_until_ready(out)

    ref = albert_layer_ref(x, params)
    # exact softmax reciprocal + all-f32 matmuls -> tight tolerance vs. f32 reference
    np.testing.assert_allclose(np.asarray(out), np.asarray(ref), rtol=1e-4, atol=1e-4)

    print("KERNEL_OK")
</pallas_src>

<mosaic_0001>
module attributes {stable_mosaic.version = 11 : i64} {
  func.func @albert_layer_kernel(%arg0: memref<16x32xf32, #tpu.memory_space<vmem>>, %arg1: memref<32x96xf32, #tpu.memory_space<vmem>>, %arg2: memref<32x32xf32, #tpu.memory_space<vmem>>, %arg3: memref<32x64xf32, #tpu.memory_space<vmem>>, %arg4: memref<64x32xf32, #tpu.memory_space<vmem>>, %arg5: memref<24x128xf32, #tpu.memory_space<vmem>>, %arg6: memref<16x32xf32, #tpu.memory_space<vmem>>) attributes {dimension_semantics = [], scalar_prefetch = 0 : i64, scratch_operands = 0 : i64, tpu.core_type = #tpu.core_type<tc>} {
    %c0 = arith.constant 0 : index
    %c0_0 = arith.constant 0 : index
    %0 = vector.load %arg0[%c0, %c0_0] : memref<16x32xf32, #tpu.memory_space<vmem>>, vector<16x32xf32>
    %c0_1 = arith.constant 0 : index
    %c0_2 = arith.constant 0 : index
    %1 = vector.load %arg5[%c0_1, %c0_2] : memref<24x128xf32, #tpu.memory_space<vmem>>, vector<1x96xf32>
    %c1 = arith.constant 1 : index
    %c0_3 = arith.constant 0 : index
    %2 = vector.load %arg5[%c1, %c0_3] : memref<24x128xf32, #tpu.memory_space<vmem>>, vector<1x32xf32>
    %c2 = arith.constant 2 : index
    %c0_4 = arith.constant 0 : index
    %3 = vector.load %arg5[%c2, %c0_4] : memref<24x128xf32, #tpu.memory_space<vmem>>, vector<1x32xf32>
    %c3 = arith.constant 3 : index
    %c0_5 = arith.constant 0 : index
    %4 = vector.load %arg5[%c3, %c0_5] : memref<24x128xf32, #tpu.memory_space<vmem>>, vector<1x32xf32>
    %c4 = arith.constant 4 : index
    %c0_6 = arith.constant 0 : index
    %5 = vector.load %arg5[%c4, %c0_6] : memref<24x128xf32, #tpu.memory_space<vmem>>, vector<1x64xf32>
    %c5 = arith.constant 5 : index
    %c0_7 = arith.constant 0 : index
    %6 = vector.load %arg5[%c5, %c0_7] : memref<24x128xf32, #tpu.memory_space<vmem>>, vector<1x32xf32>
    %c6 = arith.constant 6 : index
    %c0_8 = arith.constant 0 : index
    %7 = vector.load %arg5[%c6, %c0_8] : memref<24x128xf32, #tpu.memory_space<vmem>>, vector<1x32xf32>
    %c7 = arith.constant 7 : index
    %c0_9 = arith.constant 0 : index
    %8 = vector.load %arg5[%c7, %c0_9] : memref<24x128xf32, #tpu.memory_space<vmem>>, vector<1x32xf32>
    %c8 = arith.constant 8 : index
    %c0_10 = arith.constant 0 : index
    %9 = vector.load %arg5[%c8, %c0_10] : memref<24x128xf32, #tpu.memory_space<vmem>>, vector<16x16xf32>
    %c0_11 = arith.constant 0 : index
    %c0_12 = arith.constant 0 : index
    %10 = vector.load %arg1[%c0_11, %c0_12] : memref<32x96xf32, #tpu.memory_space<vmem>>, vector<32x96xf32>
    %cst = arith.constant dense<0.000000e+00> : vector<16x96xf32>
    %11 = tpu.matmul %0, %10, %cst {dimension_numbers = #tpu.dot_dimension_numbers<[1], [0], [0], [1], [0, 0, 1, 1], [], []>} : vector<16x32xf32>, vector<32x96xf32>, vector<16x96xf32> -> vector<16x96xf32>
    %12 = vector.broadcast %1 : vector<1x96xf32> to vector<16x96xf32>
    %13 = arith.addf %11, %12 : vector<16x96xf32>
    %14 = vector.extract_strided_slice %13 {offsets = [0, 0], sizes = [16, 8], strides = [1, 1]} : vector<16x96xf32> to vector<16x8xf32>
    %15 = vector.extract_strided_slice %13 {offsets = [0, 32], sizes = [16, 8], strides = [1, 1]} : vector<16x96xf32> to vector<16x8xf32>
    %16 = vector.extract_strided_slice %13 {offsets = [0, 64], sizes = [16, 8], strides = [1, 1]} : vector<16x96xf32> to vector<16x8xf32>
    %cst_13 = arith.constant dense<0.000000e+00> : vector<16x16xf32>
    %17 = tpu.matmul %14, %15, %cst_13 {dimension_numbers = #tpu.dot_dimension_numbers<[1], [1], [0], [0], [0, 0, 1, 0], [], []>} : vector<16x8xf32>, vector<16x8xf32>, vector<16x16xf32> -> vector<16x16xf32>
    %18 = arith.addf %17, %9 : vector<16x16xf32>
    %cst_14 = arith.constant dense<0xFF800000> : vector<16xf32>
    %19 = vector.multi_reduction <maximumf>, %18, %cst_14 [1] : vector<16x16xf32> to vector<16xf32>
    %20 = vector.shape_cast %19 : vector<16xf32> to vector<16x1xf32>
    %21 = vector.broadcast %20 : vector<16x1xf32> to vector<16x16xf32>
    %22 = arith.subf %18, %21 : vector<16x16xf32>
    %23 = math.exp %22 : vector<16x16xf32>
    %cst_15 = arith.constant dense<0.000000e+00> : vector<16xf32>
    %24 = vector.multi_reduction <add>, %23, %cst_15 [1] : vector<16x16xf32> to vector<16xf32>
    %25 = vector.shape_cast %24 : vector<16xf32> to vector<16x1xf32>
    %26 = vector.broadcast %25 : vector<16x1xf32> to vector<16x16xf32>
    %27 = arith.divf %23, %26 : vector<16x16xf32>
    %cst_16 = arith.constant dense<0.000000e+00> : vector<16x8xf32>
    %28 = tpu.matmul %27, %16, %cst_16 {dimension_numbers = #tpu.dot_dimension_numbers<[1], [0], [0], [1], [0, 0, 1, 1], [], []>} : vector<16x16xf32>, vector<16x8xf32>, vector<16x8xf32> -> vector<16x8xf32>
    %29 = vector.extract_strided_slice %13 {offsets = [0, 8], sizes = [16, 8], strides = [1, 1]} : vector<16x96xf32> to vector<16x8xf32>
    %30 = vector.extract_strided_slice %13 {offsets = [0, 40], sizes = [16, 8], strides = [1, 1]} : vector<16x96xf32> to vector<16x8xf32>
    %31 = vector.extract_strided_slice %13 {offsets = [0, 72], sizes = [16, 8], strides = [1, 1]} : vector<16x96xf32> to vector<16x8xf32>
    %cst_17 = arith.constant dense<0.000000e+00> : vector<16x16xf32>
    %32 = tpu.matmul %29, %30, %cst_17 {dimension_numbers = #tpu.dot_dimension_numbers<[1], [1], [0], [0], [0, 0, 1, 0], [], []>} : vector<16x8xf32>, vector<16x8xf32>, vector<16x16xf32> -> vector<16x16xf32>
    %33 = arith.addf %32, %9 : vector<16x16xf32>
    %cst_18 = arith.constant dense<0xFF800000> : vector<16xf32>
    %34 = vector.multi_reduction <maximumf>, %33, %cst_18 [1] : vector<16x16xf32> to vector<16xf32>
    %35 = vector.shape_cast %34 : vector<16xf32> to vector<16x1xf32>
    %36 = vector.broadcast %35 : vector<16x1xf32> to vector<16x16xf32>
    %37 = arith.subf %33, %36 : vector<16x16xf32>
    %38 = math.exp %37 : vector<16x16xf32>
    %cst_19 = arith.constant dense<0.000000e+00> : vector<16xf32>
    %39 = vector.multi_reduction <add>, %38, %cst_19 [1] : vector<16x16xf32> to vector<16xf32>
    %40 = vector.shape_cast %39 : vector<16xf32> to vector<16x1xf32>
    %41 = vector.broadcast %40 : vector<16x1xf32> to vector<16x16xf32>
    %42 = arith.divf %38, %41 : vector<16x16xf32>
    %cst_20 = arith.constant dense<0.000000e+00> : vector<16x8xf32>
    %43 = tpu.matmul %42, %31, %cst_20 {dimension_numbers = #tpu.dot_dimension_numbers<[1], [0], [0], [1], [0, 0, 1, 1], [], []>} : vector<16x16xf32>, vector<16x8xf32>, vector<16x8xf32> -> vector<16x8xf32>
    %44 = vector.extract_strided_slice %13 {offsets = [0, 16], sizes = [16, 8], strides = [1, 1]} : vector<16x96xf32> to vector<16x8xf32>
    %45 = vector.extract_strided_slice %13 {offsets = [0, 48], sizes = [16, 8], strides = [1, 1]} : vector<16x96xf32> to vector<16x8xf32>
    %46 = vector.extract_strided_slice %13 {offsets = [0, 80], sizes = [16, 8], strides = [1, 1]} : vector<16x96xf32> to vector<16x8xf32>
    %cst_21 = arith.constant dense<0.000000e+00> : vector<16x16xf32>
    %47 = tpu.matmul %44, %45, %cst_21 {dimension_numbers = #tpu.dot_dimension_numbers<[1], [1], [0], [0], [0, 0, 1, 0], [], []>} : vector<16x8xf32>, vector<16x8xf32>, vector<16x16xf32> -> vector<16x16xf32>
    %48 = arith.addf %47, %9 : vector<16x16xf32>
    %cst_22 = arith.constant dense<0xFF800000> : vector<16xf32>
    %49 = vector.multi_reduction <maximumf>, %48, %cst_22 [1] : vector<16x16xf32> to vector<16xf32>
    %50 = vector.shape_cast %49 : vector<16xf32> to vector<16x1xf32>
    %51 = vector.broadcast %50 : vector<16x1xf32> to vector<16x16xf32>
    %52 = arith.subf %48, %51 : vector<16x16xf32>
    %53 = math.exp %52 : vector<16x16xf32>
    %cst_23 = arith.constant dense<0.000000e+00> : vector<16xf32>
    %54 = vector.multi_reduction <add>, %53, %cst_23 [1] : vector<16x16xf32> to vector<16xf32>
    %55 = vector.shape_cast %54 : vector<16xf32> to vector<16x1xf32>
    %56 = vector.broadcast %55 : vector<16x1xf32> to vector<16x16xf32>
    %57 = arith.divf %53, %56 : vector<16x16xf32>
    %cst_24 = arith.constant dense<0.000000e+00> : vector<16x8xf32>
    %58 = tpu.matmul %57, %46, %cst_24 {dimension_numbers = #tpu.dot_dimension_numbers<[1], [0], [0], [1], [0, 0, 1, 1], [], []>} : vector<16x16xf32>, vector<16x8xf32>, vector<16x8xf32> -> vector<16x8xf32>
    %59 = vector.extract_strided_slice %13 {offsets = [0, 24], sizes = [16, 8], strides = [1, 1]} : vector<16x96xf32> to vector<16x8xf32>
    %60 = vector.extract_strided_slice %13 {offsets = [0, 56], sizes = [16, 8], strides = [1, 1]} : vector<16x96xf32> to vector<16x8xf32>
    %61 = vector.extract_strided_slice %13 {offsets = [0, 88], sizes = [16, 8], strides = [1, 1]} : vector<16x96xf32> to vector<16x8xf32>
    %cst_25 = arith.constant dense<0.000000e+00> : vector<16x16xf32>
    %62 = tpu.matmul %59, %60, %cst_25 {dimension_numbers = #tpu.dot_dimension_numbers<[1], [1], [0], [0], [0, 0, 1, 0], [], []>} : vector<16x8xf32>, vector<16x8xf32>, vector<16x16xf32> -> vector<16x16xf32>
    %63 = arith.addf %62, %9 : vector<16x16xf32>
    %cst_26 = arith.constant dense<0xFF800000> : vector<16xf32>
    %64 = vector.multi_reduction <maximumf>, %63, %cst_26 [1] : vector<16x16xf32> to vector<16xf32>
    %65 = vector.shape_cast %64 : vector<16xf32> to vector<16x1xf32>
    %66 = vector.broadcast %65 : vector<16x1xf32> to vector<16x16xf32>
    %67 = arith.subf %63, %66 : vector<16x16xf32>
    %68 = math.exp %67 : vector<16x16xf32>
    %cst_27 = arith.constant dense<0.000000e+00> : vector<16xf32>
    %69 = vector.multi_reduction <add>, %68, %cst_27 [1] : vector<16x16xf32> to vector<16xf32>
    %70 = vector.shape_cast %69 : vector<16xf32> to vector<16x1xf32>
    %71 = vector.broadcast %70 : vector<16x1xf32> to vector<16x16xf32>
    %72 = arith.divf %68, %71 : vector<16x16xf32>
    %cst_28 = arith.constant dense<0.000000e+00> : vector<16x8xf32>
    %73 = tpu.matmul %72, %61, %cst_28 {dimension_numbers = #tpu.dot_dimension_numbers<[1], [0], [0], [1], [0, 0, 1, 1], [], []>} : vector<16x16xf32>, vector<16x8xf32>, vector<16x8xf32> -> vector<16x8xf32>
    %74 = tpu.concatenate %28, %43, %58, %73 in 1 : vector<16x8xf32>, vector<16x8xf32>, vector<16x8xf32>, vector<16x8xf32> -> vector<16x32xf32>
    %c0_29 = arith.constant 0 : index
    %c0_30 = arith.constant 0 : index
    %75 = vector.load %arg2[%c0_29, %c0_30] : memref<32x32xf32, #tpu.memory_space<vmem>>, vector<32x32xf32>
    %cst_31 = arith.constant dense<0.000000e+00> : vector<16x32xf32>
    %76 = tpu.matmul %74, %75, %cst_31 {dimension_numbers = #tpu.dot_dimension_numbers<[1], [0], [0], [1], [0, 0, 1, 1], [], []>} : vector<16x32xf32>, vector<32x32xf32>, vector<16x32xf32> -> vector<16x32xf32>
    %77 = vector.broadcast %2 : vector<1x32xf32> to vector<16x32xf32>
    %78 = arith.addf %76, %77 : vector<16x32xf32>
    %79 = arith.addf %0, %78 : vector<16x32xf32>
    %cst_32 = arith.constant dense<0.000000e+00> : vector<16xf32>
    %80 = vector.multi_reduction <add>, %79, %cst_32 [1] : vector<16x32xf32> to vector<16xf32>
    %81 = vector.shape_cast %80 : vector<16xf32> to vector<16x1xf32>
    %cst_33 = arith.constant 3.200000e+01 : f32
    %82 = vector.broadcast %cst_33 : f32 to vector<16x1xf32>
    %83 = arith.divf %81, %82 : vector<16x1xf32>
    %84 = vector.broadcast %83 : vector<16x1xf32> to vector<16x32xf32>
    %85 = arith.subf %79, %84 : vector<16x32xf32>
    %86 = arith.mulf %85, %85 : vector<16x32xf32>
    %cst_34 = arith.constant dense<0.000000e+00> : vector<16xf32>
    %87 = vector.multi_reduction <add>, %86, %cst_34 [1] : vector<16x32xf32> to vector<16xf32>
    %88 = vector.shape_cast %87 : vector<16xf32> to vector<16x1xf32>
    %cst_35 = arith.constant 3.200000e+01 : f32
    %89 = vector.broadcast %cst_35 : f32 to vector<16x1xf32>
    %90 = arith.divf %88, %89 : vector<16x1xf32>
    %cst_36 = arith.constant 9.99999996E-13 : f32
    %91 = vector.broadcast %cst_36 : f32 to vector<16x1xf32>
    %92 = arith.addf %90, %91 : vector<16x1xf32>
    %93 = math.rsqrt %92 : vector<16x1xf32>
    %94 = vector.broadcast %83 : vector<16x1xf32> to vector<16x32xf32>
    %95 = arith.subf %79, %94 : vector<16x32xf32>
    %96 = vector.broadcast %93 : vector<16x1xf32> to vector<16x32xf32>
    %97 = arith.mulf %95, %96 : vector<16x32xf32>
    %98 = vector.broadcast %3 : vector<1x32xf32> to vector<16x32xf32>
    %99 = arith.mulf %97, %98 : vector<16x32xf32>
    %100 = vector.broadcast %4 : vector<1x32xf32> to vector<16x32xf32>
    %101 = arith.addf %99, %100 : vector<16x32xf32>
    %c0_37 = arith.constant 0 : index
    %c0_38 = arith.constant 0 : index
    %102 = vector.load %arg3[%c0_37, %c0_38] : memref<32x64xf32, #tpu.memory_space<vmem>>, vector<32x64xf32>
    %cst_39 = arith.constant dense<0.000000e+00> : vector<16x64xf32>
    %103 = tpu.matmul %101, %102, %cst_39 {dimension_numbers = #tpu.dot_dimension_numbers<[1], [0], [0], [1], [0, 0, 1, 1], [], []>} : vector<16x32xf32>, vector<32x64xf32>, vector<16x64xf32> -> vector<16x64xf32>
    %104 = vector.broadcast %5 : vector<1x64xf32> to vector<16x64xf32>
    %105 = arith.addf %103, %104 : vector<16x64xf32>
    %cst_40 = arith.constant 5.000000e-01 : f32
    %106 = vector.broadcast %cst_40 : f32 to vector<16x64xf32>
    %107 = arith.mulf %105, %106 : vector<16x64xf32>
    %cst_41 = arith.constant 1.41421354 : f32
    %108 = vector.broadcast %cst_41 : f32 to vector<16x64xf32>
    %109 = arith.divf %105, %108 : vector<16x64xf32>
    %110 = math.erf %109 : vector<16x64xf32>
    %cst_42 = arith.constant 1.000000e+00 : f32
    %111 = vector.broadcast %cst_42 : f32 to vector<16x64xf32>
    %112 = arith.addf %111, %110 : vector<16x64xf32>
    %113 = arith.mulf %107, %112 : vector<16x64xf32>
    %c0_43 = arith.constant 0 : index
    %c0_44 = arith.constant 0 : index
    %114 = vector.load %arg4[%c0_43, %c0_44] : memref<64x32xf32, #tpu.memory_space<vmem>>, vector<64x32xf32>
    %cst_45 = arith.constant dense<0.000000e+00> : vector<16x32xf32>
    %115 = tpu.matmul %113, %114, %cst_45 {dimension_numbers = #tpu.dot_dimension_numbers<[1], [0], [0], [1], [0, 0, 1, 1], [], []>} : vector<16x64xf32>, vector<64x32xf32>, vector<16x32xf32> -> vector<16x32xf32>
    %116 = vector.broadcast %6 : vector<1x32xf32> to vector<16x32xf32>
    %117 = arith.addf %115, %116 : vector<16x32xf32>
    %118 = arith.addf %117, %101 : vector<16x32xf32>
    %cst_46 = arith.constant dense<0.000000e+00> : vector<16xf32>
    %119 = vector.multi_reduction <add>, %118, %cst_46 [1] : vector<16x32xf32> to vector<16xf32>
    %120 = vector.shape_cast %119 : vector<16xf32> to vector<16x1xf32>
    %cst_47 = arith.constant 3.200000e+01 : f32
    %121 = vector.broadcast %cst_47 : f32 to vector<16x1xf32>
    %122 = arith.divf %120, %121 : vector<16x1xf32>
    %123 = vector.broadcast %122 : vector<16x1xf32> to vector<16x32xf32>
    %124 = arith.subf %118, %123 : vector<16x32xf32>
    %125 = arith.mulf %124, %124 : vector<16x32xf32>
    %cst_48 = arith.constant dense<0.000000e+00> : vector<16xf32>
    %126 = vector.multi_reduction <add>, %125, %cst_48 [1] : vector<16x32xf32> to vector<16xf32>
    %127 = vector.shape_cast %126 : vector<16xf32> to vector<16x1xf32>
    %cst_49 = arith.constant 3.200000e+01 : f32
    %128 = vector.broadcast %cst_49 : f32 to vector<16x1xf32>
    %129 = arith.divf %127, %128 : vector<16x1xf32>
    %cst_50 = arith.constant 9.99999996E-13 : f32
    %130 = vector.broadcast %cst_50 : f32 to vector<16x1xf32>
    %131 = arith.addf %129, %130 : vector<16x1xf32>
    %132 = math.rsqrt %131 : vector<16x1xf32>
    %133 = vector.broadcast %122 : vector<16x1xf32> to vector<16x32xf32>
    %134 = arith.subf %118, %133 : vector<16x32xf32>
    %135 = vector.broadcast %132 : vector<16x1xf32> to vector<16x32xf32>
    %136 = arith.mulf %134, %135 : vector<16x32xf32>
    %137 = vector.broadcast %7 : vector<1x32xf32> to vector<16x32xf32>
    %138 = arith.mulf %136, %137 : vector<16x32xf32>
    %139 = vector.broadcast %8 : vector<1x32xf32> to vector<16x32xf32>
    %140 = arith.addf %138, %139 : vector<16x32xf32>
    %c0_51 = arith.constant 0 : index
    %c0_52 = arith.constant 0 : index
    %141 = vector.load %arg6[%c0_51, %c0_52] : memref<16x32xf32, #tpu.memory_space<vmem>>, vector<16x32xf32>
    tpu.vector_store %arg6[%c0_51, %c0_52], %140 {strides = array<i32>} : memref<16x32xf32, #tpu.memory_space<vmem>>, vector<16x32xf32>,
    return
  }
}

</mosaic_0001>

<llo_original>
// kernel: albert_layer.1
$region0: #{albert_layer.1}
  #allocation0 [shape = 'u32[]', space=smem, size = 0x4, offset = 0x4, fixed_abs, tag = 'smem constant byte address 0x4 - core index']
  #allocation1 [shape = 'u32[72,128]{1,0:T(1,128)}', space=vmem, size = 0x9000, scoped, tag = 'internal scratch']
  %s0 = inlined_call_operand.hbm [shape: f32[16,32], index: 0, kind: input, shape index: {}]
  %s1 = inlined_call_operand.vmem [shape: f32[32,96], index: 1, kind: input, shape index: {}]
  %s2 = inlined_call_operand.vmem [shape: f32[32,32], index: 2, kind: input, shape index: {}]
  %s3 = inlined_call_operand.vmem [shape: f32[32,64], index: 3, kind: input, shape index: {}]
  %s4 = inlined_call_operand.vmem [shape: f32[64,32], index: 4, kind: input, shape index: {}]
  %s5 = inlined_call_operand.hbm [shape: f32[24,128], index: 5, kind: input, shape index: {}]
  %s6 = inlined_call_operand.hbm [shape: f32[16,32], index: 6, kind: output, shape index: {}]
  %s7 = sld [smem:[#allocation0]]
  $region42: #{albert_layer.1} parent=0
    _
  %s9 = ssub.s32 1, %s7
  %s10 = scalar_select 0, %s9, %s7
  $region1: #{albert_layer.1} parent=0
    #allocation2 [shape = 'u8[8192]{0}', space=vmem, size = 0x2000, scoped, tag = 'input window, operand 0, single buffered']
    #allocation3 [shape = 's32[1]{0}', space=sflag, size = 0x4, scoped, tag = 'scoped memory for albert_layer.1']
    #allocation4 [shape = 's32[1]{0}', space=sflag, size = 0x4, scoped, tag = 'scoped memory for albert_layer.1']
    #allocation5 [shape = 'u8[12288]{0}', space=vmem, size = 0x3000, scoped, tag = 'input window, operand 5, single buffered']
    #allocation6 [shape = 's32[1]{0}', space=sflag, size = 0x4, scoped, tag = 'scoped memory for albert_layer.1']
    #allocation7 [shape = 'u8[8192]{0}', space=vmem, size = 0x2000, scoped, tag = 'output window, operand 0, single buffered']
    %11 = vsyncpa [#allocation3], 0
    %12 = vsyncpa [#allocation6], 0
    %13 = vsyncpa [#allocation4], 0
    // Predicated region
    $region2: #{albert_layer.1} parent=1 // pred_check
      _
    $region3: #{albert_layer.1} parent=1 // pred_check_branch
      %15 = sbr.rel (0) target = $region5
    $region4: #{albert_layer.1} parent=1 // pred_region
      %17 = vsyncadd [#allocation3], 0
      %s18 = sshll.u32 %s0, 4
      %s19 = int_to_ptr.hbm [resolvable:$true] %s18
      %s20 = sshll.u32 [#allocation2], 4
      %s21 = int_to_ptr.vmem [resolvable:$true] %s20
      %26 = dma.hbm_to_vmem [thread:$0]  %s19, 256, %s21, [#allocation3], 128, 128, 8
    $region5: #{albert_layer.1} parent=1 // pred_fallthru
      _
    // Predicated region
    $region6: #{albert_layer.1} parent=1 // pred_check
      _
    $region7: #{albert_layer.1} parent=1 // pred_check_branch
      %28 = sbr.rel (0) target = $region9
    $region8: #{albert_layer.1} parent=1 // pred_region
      _
    $region9: #{albert_layer.1} parent=1 // pred_fallthru
      _
    // Predicated region
    $region10: #{albert_layer.1} parent=1 // pred_check
      _
    $region11: #{albert_layer.1} parent=1 // pred_check_branch
      %30 = sbr.rel (0) target = $region13
    $region12: #{albert_layer.1} parent=1 // pred_region
      _
    $region13: #{albert_layer.1} parent=1 // pred_fallthru
      _
    // Predicated region
    $region14: #{albert_layer.1} parent=1 // pred_check
      _
    $region15: #{albert_layer.1} parent=1 // pred_check_branch
      %32 = sbr.rel (0) target = $region17
    $region16: #{albert_layer.1} parent=1 // pred_region
      _
    $region17: #{albert_layer.1} parent=1 // pred_fallthru
      _
    // Predicated region
    $region18: #{albert_layer.1} parent=1 // pred_check
      _
    $region19: #{albert_layer.1} parent=1 // pred_check_branch
      %34 = sbr.rel (0) target = $region21
    $region20: #{albert_layer.1} parent=1 // pred_region
      _
    $region21: #{albert_layer.1} parent=1 // pred_fallthru
      _
    // Predicated region
    $region22: #{albert_layer.1} parent=1 // pred_check
      _
    $region23: #{albert_layer.1} parent=1 // pred_check_branch
      %36 = sbr.rel (0) target = $region25
    $region24: #{albert_layer.1} parent=1 // pred_region
      %38 = vsyncadd [#allocation6], 0
      %s39 = sshll.u32 %s5, 4
      %s40 = int_to_ptr.hbm [resolvable:$true] %s39
      %s41 = sshll.u32 [#allocation5], 4
      %s42 = int_to_ptr.vmem [resolvable:$true] %s41
      %47 = dma.hbm_to_vmem [thread:$0]  %s40, 384, %s42, [#allocation6], 128, 128, 8
    $region25: #{albert_layer.1} parent=1 // pred_fallthru
      _
    // Predicated region
    $region26: #{albert_layer.1} parent=1 // pred_check
      _
    $region27: #{albert_layer.1} parent=1 // pred_check_branch
      %49 = sbr.rel (0) target = $region29
    $region28: #{albert_layer.1} parent=1 // pred_region
      %51 = dma.done [#allocation3], 256
    $region29: #{albert_layer.1} parent=1 // pred_fallthru
      _
    // Predicated region
    $region30: #{albert_layer.1} parent=1 // pred_check
      _
    $region31: #{albert_layer.1} parent=1 // pred_check_branch
      %53 = sbr.rel (0) target = $region33
    $region32: #{albert_layer.1} parent=1 // pred_region
      %55 = dma.done [#allocation6], 384
    $region33: #{albert_layer.1} parent=1 // pred_fallthru
      _
    %v56 = vld [vmem:[#allocation2] sm:$0xff]
    %v57 = vld [vmem:[#allocation2 + $0x8] sm:$0xff]
    %v58 = vld [vmem:[#allocation5] sm:$0x1]
    %v59 = vld [vmem:[#allocation5 + $0x1] sm:$0x1]
    %v60 = vld [vmem:[#allocation5 + $0x2] sm:$0x1]
    %v61 = vld [vmem:[#allocation5 + $0x3] sm:$0x1]
    %v62 = vld [vmem:[#allocation5 + $0x4] sm:$0x1]
    %v63 = vld [vmem:[#allocation5 + $0x5] sm:$0x1]
    %v64 = vld [vmem:[#allocation5 + $0x6] sm:$0x1]
    %v65 = vld [vmem:[#allocation5 + $0x7] sm:$0x1]
    %v66 = vld [vmem:[#allocation5 + $0x8] sm:$0xff]
    %v67 = vld [vmem:[#allocation5 + $0x10] sm:$0xff]
    %v68 = vld [vmem:[%s1] sm:$0xff]
    %v69 = vld [vmem:[%s1 + $0x8] sm:$0xff]
    %v70 = vld [vmem:[%s1 + $0x10] sm:$0xff]
    %v71 = vld [vmem:[%s1 + $0x18] sm:$0xff]
    %v72 = vperm.slane %v58, 0
    %vm73 = vcmask 261120
    %v75 = vsel %vm73, %v56, 0
    %v78 = vsel %vm73, %v57, 0
    %80 = vmatpush.msra.mxu0 0.0
    %81 = vmatpush.msra.mxu0 0.0
    %82 = vmatpush.msra.mxu0 0.0
    %83 = vmatpush.msra.mxu0 0.0
    %84 = vmatpush.msra.mxu0 0.0
    %85 = vmatpush.msra.mxu0 0.0
    %86 = vmatpush.msra.mxu0 0.0
    %87 = vmatpush.msra.mxu0 0.0
    %88 = vmatpush.msra.mxu0 0.0
    %89 = vmatpush.msra.mxu0 0.0
    %90 = vmatpush.msra.mxu0 0.0
    %91 = vmatpush.msra.mxu0 0.0
    %92 = vmatpush.msra.mxu0 %v71
    %93 = vmatpush.msra.mxu0 %v70
    %94 = vmatpush.msra.mxu0 %v69
    %95 = vmatpush.msra.mxu0 %v68
    %96 = vmatmul.f32.gmra.mxu0 %v75
    %v97 = vpop.f32.mrf.mxu0
    %v98 = vadd.f32 %v72, %v97
    %99 = vmatmul.f32.gmra.mxu0 %v78
    %v100 = vpop.f32.mrf.mxu0
    %v101 = vadd.f32 %v72, %v100
    %102 = vdwg.mxu0
    %105 = vrot.lane.b32.xlu0 %v98, 96
    %v106 = vpop.permute.xlu0 %105
    %107 = vrot.lane.b32.xlu0 %v101, 96
    %v108 = vpop.permute.xlu0 %107
    %vm109 = vcmask 64512
    %v110 = vsel %vm109, %v98, 0
    %v112 = vsel %vm109, %v101, 0
    %v114 = vsel %vm109, %v106, 0
    %v116 = vsel %vm109, %v108, 0
    %118 = vmatpush.xpose.msra.mxu0 0.0
    %119 = vmatpush.xpose.msra.mxu0 0.0
    %120 = vmatpush.xpose.msra.mxu0 0.0
    %121 = vmatpush.xpose.msra.mxu0 0.0
    %122 = vmatpush.xpose.msra.mxu0 0.0
    %123 = vmatpush.xpose.msra.mxu0 0.0
    %124 = vmatpush.xpose.msra.mxu0 0.0
    %125 = vmatpush.xpose.msra.mxu0 0.0
    %126 = vmatpush.xpose.msra.mxu0 0.0
    %127 = vmatpush.xpose.msra.mxu0 0.0
    %128 = vmatpush.xpose.msra.mxu0 0.0
    %129 = vmatpush.xpose.msra.mxu0 0.0
    %130 = vmatpush.xpose.msra.mxu0 0.0
    %131 = vmatpush.xpose.msra.mxu0 0.0
    %132 = vmatpush.xpose.msra.mxu0 %v116
    %133 = vmatpush.xpose.msra.mxu0 %v114
    %134 = vmatmul.f32.gmra.mxu0 %v110
    %v135 = vpop.f32.mrf.mxu0
    %v136 = vadd.f32 %v66, %v135
    %137 = vmatmul.f32.gmra.mxu0 %v112
    %v138 = vpop.f32.mrf.mxu0
    %v139 = vadd.f32 %v67, %v138
    %140 = vdwg.mxu0
    %vm141 = vcmask 130048
    %v142 = vsel %vm141, %v136, -inf
    %143 = vmax.xlane.f32.xlu0 %v142
    %v144 = vpop.xlane.xlu0 %143
    %v145 = vsel %vm141, %v139, -inf
    %146 = vmax.xlane.f32.xlu0 %v145
    %v147 = vpop.xlane.xlu0 %146
    %v148 = vsub.f32 %v136, %v144
    %v149 = vsub.f32 %v139, %v147
    %v150 = vmul.f32 %v148, 1.442695
    %v151 = vpow.pop %v150
    %v152 = vmul.f32 %v149, 1.442695
    %v153 = vpow.pop %v152
    %v154 = vsel %vm141, %v151, 0.0
    %155 = vadd.xlane.f32.xlu0 %v154
    %v156 = vpop.xlane.xlu0 %155
    %v157 = vsel %vm141, %v153, 0.0
    %158 = vadd.xlane.f32.xlu0 %v157
    %v159 = vpop.xlane.xlu0 %158
    %v160 = vrcp.pop %v156
    %v161 = vmul.f32 %v156, %v160
    %v162 = vsub.f32 1.0, %v161
    %v163 = vmul.f32 %v160, %v162
    %v164 = vadd.f32 %v160, %v163
    %vm165 = vweird.f32 %v156
    %vm166 = vweird.f32 %v160
    %vm167 = vmor %vm165, %vm166
    %v168 = vsel %vm167, %v160, %v164
    %v169 = vand.u32 2147483647, %v156
    %vm170 = vcmp.eq.f32.partialorder %v169, 8.507059e+37
    %v171 = vand.u32 %v156, 2147483648
    %v172 = vor.u32 1.1754944e-38, %v171
    %v173 = vsel %vm170, %v172, %v168
    %v174 = vmul.f32 %v151, %v173
    %v175 = vrcp.pop %v159
    %v176 = vmul.f32 %v159, %v175
    %v177 = vsub.f32 1.0, %v176
    %v178 = vmul.f32 %v175, %v177
    %v179 = vadd.f32 %v175, %v178
    %vm180 = vweird.f32 %v159
    %vm181 = vweird.f32 %v175
    %vm182 = vmor %vm180, %vm181
    %v183 = vsel %vm182, %v175, %v179
    %v184 = vand.u32 2147483647, %v159
    %vm185 = vcmp.eq.f32.partialorder %v184, 8.507059e+37
    %v186 = vand.u32 %v159, 2147483648
    %v187 = vor.u32 1.1754944e-38, %v186
    %v188 = vsel %vm185, %v187, %v183
    %v189 = vmul.f32 %v153, %v188
    %190 = vrot.lane.b32.xlu0 %v98, 64
    %v191 = vpop.permute.xlu0 %190
    %192 = vrot.lane.b32.xlu0 %v101, 64
    %v193 = vpop.permute.xlu0 %192
    %v197 = vsel %vm141, %v174, 0
    %v200 = vsel %vm141, %v189, 0
    %202 = vmatpush.msra.mxu0 0.0
    %203 = vmatpush.msra.mxu0 0.0
    %204 = vmatpush.msra.mxu0 0.0
    %205 = vmatpush.msra.mxu0 0.0
    %206 = vmatpush.msra.mxu0 0.0
    %207 = vmatpush.msra.mxu0 0.0
    %208 = vmatpush.msra.mxu0 0.0
    %209 = vmatpush.msra.mxu0 0.0
    %210 = vmatpush.msra.mxu0 0.0
    %211 = vmatpush.msra.mxu0 0.0
    %212 = vmatpush.msra.mxu0 0.0
    %213 = vmatpush.msra.mxu0 0.0
    %214 = vmatpush.msra.mxu0 0.0
    %215 = vmatpush.msra.mxu0 0.0
    %216 = vmatpush.msra.mxu0 %v193
    %217 = vmatpush.msra.mxu0 %v191
    %218 = vmatmul.f32.gmra.mxu0 %v197
    %v219 = vpop.f32.mrf.mxu0
    %v220 = vadd.f32 0.0, %v219
    %221 = vmatmul.f32.gmra.mxu0 %v200
    %v222 = vpop.f32.mrf.mxu0
    %v223 = vadd.f32 0.0, %v222
    %224 = vdwg.mxu0
    %225 = vrot.lane.b32.xlu0 %v98, 120
    %v226 = vpop.permute.xlu0 %225
    %227 = vrot.lane.b32.xlu0 %v101, 120
    %v228 = vpop.permute.xlu0 %227
    %229 = vrot.lane.b32.xlu0 %v98, 88
    %v230 = vpop.permute.xlu0 %229
    %231 = vrot.lane.b32.xlu0 %v101, 88
    %v232 = vpop.permute.xlu0 %231
    %v233 = vsel %vm109, %v226, 0
    %v235 = vsel %vm109, %v228, 0
    %v237 = vsel %vm109, %v230, 0
    %v239 = vsel %vm109, %v232, 0
    %241 = vmatpush.xpose.msra.mxu0 0.0
    %242 = vmatpush.xpose.msra.mxu0 0.0
    %243 = vmatpush.xpose.msra.mxu0 0.0
    %244 = vmatpush.xpose.msra.mxu0 0.0
    %245 = vmatpush.xpose.msra.mxu0 0.0
    %246 = vmatpush.xpose.msra.mxu0 0.0
    %247 = vmatpush.xpose.msra.mxu0 0.0
    %248 = vmatpush.xpose.msra.mxu0 0.0
    %249 = vmatpush.xpose.msra.mxu0 0.0
    %250 = vmatpush.xpose.msra.mxu0 0.0
    %251 = vmatpush.xpose.msra.mxu0 0.0
    %252 = vmatpush.xpose.msra.mxu0 0.0
    %253 = vmatpush.xpose.msra.mxu0 0.0
    %254 = vmatpush.xpose.msra.mxu0 0.0
    %255 = vmatpush.xpose.msra.mxu0 %v239
    %256 = vmatpush.xpose.msra.mxu0 %v237
    %257 = vmatmul.f32.gmra.mxu0 %v233
    %v258 = vpop.f32.mrf.mxu0
    %v259 = vadd.f32 %v66, %v258
    %260 = vmatmul.f32.gmra.mxu0 %v235
    %v261 = vpop.f32.mrf.mxu0
    %v262 = vadd.f32 %v67, %v261
    %263 = vdwg.mxu0
    %v264 = vsel %vm141, %v259, -inf
    %265 = vmax.xlane.f32.xlu0 %v264
    %v266 = vpop.xlane.xlu0 %265
    %v267 = vsel %vm141, %v262, -inf
    %268 = vmax.xlane.f32.xlu0 %v267
    %v269 = vpop.xlane.xlu0 %268
    %v270 = vsub.f32 %v259, %v266
    %v271 = vsub.f32 %v262, %v269
    %v272 = vmul.f32 %v270, 1.442695
    %v273 = vpow.pop %v272
    %v274 = vmul.f32 %v271, 1.442695
    %v275 = vpow.pop %v274
    %v276 = vsel %vm141, %v273, 0.0
    %277 = vadd.xlane.f32.xlu0 %v276
    %v278 = vpop.xlane.xlu0 %277
    %v279 = vsel %vm141, %v275, 0.0
    %280 = vadd.xlane.f32.xlu0 %v279
    %v281 = vpop.xlane.xlu0 %280
    %v282 = vrcp.pop %v278
    %v283 = vmul.f32 %v278, %v282
    %v284 = vsub.f32 1.0, %v283
    %v285 = vmul.f32 %v282, %v284
    %v286 = vadd.f32 %v282, %v285
    %vm287 = vweird.f32 %v278
    %vm288 = vweird.f32 %v282
    %vm289 = vmor %vm287, %vm288
    %v290 = vsel %vm289, %v282, %v286
    %v291 = vand.u32 2147483647, %v278
    %vm292 = vcmp.eq.f32.partialorder %v291, 8.507059e+37
    %v293 = vand.u32 %v278, 2147483648
    %v294 = vor.u32 1.1754944e-38, %v293
    %v295 = vsel %vm292, %v294, %v290
    %v296 = vmul.f32 %v273, %v295
    %v297 = vrcp.pop %v281
    %v298 = vmul.f32 %v281, %v297
    %v299 = vsub.f32 1.0, %v298
    %v300 = vmul.f32 %v297, %v299
    %v301 = vadd.f32 %v297, %v300
    %vm302 = vweird.f32 %v281
    %vm303 = vweird.f32 %v297
    %vm304 = vmor %vm302, %vm303
    %v305 = vsel %vm304, %v297, %v301
    %v306 = vand.u32 2147483647, %v281
    %vm307 = vcmp.eq.f32.partialorder %v306, 8.507059e+37
    %v308 = vand.u32 %v281, 2147483648
    %v309 = vor.u32 1.1754944e-38, %v308
    %v310 = vsel %vm307, %v309, %v305
    %v311 = vmul.f32 %v275, %v310
    %312 = vrot.lane.b32.xlu0 %v98, 56
    %v313 = vpop.permute.xlu0 %312
    %314 = vrot.lane.b32.xlu0 %v101, 56
    %v315 = vpop.permute.xlu0 %314
    %v319 = vsel %vm141, %v296, 0
    %v322 = vsel %vm141, %v311, 0
    %324 = vmatpush.msra.mxu0 0.0
    %325 = vmatpush.msra.mxu0 0.0
    %326 = vmatpush.msra.mxu0 0.0
    %327 = vmatpush.msra.mxu0 0.0
    %328 = vmatpush.msra.mxu0 0.0
    %329 = vmatpush.msra.mxu0 0.0
    %330 = vmatpush.msra.mxu0 0.0
    %331 = vmatpush.msra.mxu0 0.0
    %332 = vmatpush.msra.mxu0 0.0
    %333 = vmatpush.msra.mxu0 0.0
    %334 = vmatpush.msra.mxu0 0.0
    %335 = vmatpush.msra.mxu0 0.0
    %336 = vmatpush.msra.mxu0 0.0
    %337 = vmatpush.msra.mxu0 0.0
    %338 = vmatpush.msra.mxu0 %v315
    %339 = vmatpush.msra.mxu0 %v313
    %340 = vmatmul.f32.gmra.mxu0 %v319
    %v341 = vpop.f32.mrf.mxu0
    %v342 = vadd.f32 0.0, %v341
    %343 = vmatmul.f32.gmra.mxu0 %v322
    %v344 = vpop.f32.mrf.mxu0
    %v345 = vadd.f32 0.0, %v344
    %346 = vdwg.mxu0
    %347 = vrot.lane.b32.xlu0 %v98, 112
    %v348 = vpop.permute.xlu0 %347
    %349 = vrot.lane.b32.xlu0 %v101, 112
    %v350 = vpop.permute.xlu0 %349
    %351 = vrot.lane.b32.xlu0 %v98, 80
    %v352 = vpop.permute.xlu0 %351
    %353 = vrot.lane.b32.xlu0 %v101, 80
    %v354 = vpop.permute.xlu0 %353
    %v355 = vsel %vm109, %v348, 0
    %v357 = vsel %vm109, %v350, 0
    %v359 = vsel %vm109, %v352, 0
    %v361 = vsel %vm109, %v354, 0
    %363 = vmatpush.xpose.msra.mxu0 0.0
    %364 = vmatpush.xpose.msra.mxu0 0.0
    %365 = vmatpush.xpose.msra.mxu0 0.0
    %366 = vmatpush.xpose.msra.mxu0 0.0
    %367 = vmatpush.xpose.msra.mxu0 0.0
    %368 = vmatpush.xpose.msra.mxu0 0.0
    %369 = vmatpush.xpose.msra.mxu0 0.0
    %370 = vmatpush.xpose.msra.mxu0 0.0
    %371 = vmatpush.xpose.msra.mxu0 0.0
    %372 = vmatpush.xpose.msra.mxu0 0.0
    %373 = vmatpush.xpose.msra.mxu0 0.0
    %374 = vmatpush.xpose.msra.mxu0 0.0
    %375 = vmatpush.xpose.msra.mxu0 0.0
    %376 = vmatpush.xpose.msra.mxu0 0.0
    %377 = vmatpush.xpose.msra.mxu0 %v361
    %378 = vmatpush.xpose.msra.mxu0 %v359
    %379 = vmatmul.f32.gmra.mxu0 %v355
    %v380 = vpop.f32.mrf.mxu0
    %v381 = vadd.f32 %v66, %v380
    %382 = vmatmul.f32.gmra.mxu0 %v357
    %v383 = vpop.f32.mrf.mxu0
    %v384 = vadd.f32 %v67, %v383
    %385 = vdwg.mxu0
    %v386 = vsel %vm141, %v381, -inf
    %387 = vmax.xlane.f32.xlu0 %v386
    %v388 = vpop.xlane.xlu0 %387
    %v389 = vsel %vm141, %v384, -inf
    %390 = vmax.xlane.f32.xlu0 %v389
    %v391 = vpop.xlane.xlu0 %390
    %v392 = vsub.f32 %v381, %v388
    %v393 = vsub.f32 %v384, %v391
    %v394 = vmul.f32 %v392, 1.442695
    %v395 = vpow.pop %v394
    %v396 = vmul.f32 %v393, 1.442695
    %v397 = vpow.pop %v396
    %v398 = vsel %vm141, %v395, 0.0
    %399 = vadd.xlane.f32.xlu0 %v398
    %v400 = vpop.xlane.xlu0 %399
    %v401 = vsel %vm141, %v397, 0.0
    %402 = vadd.xlane.f32.xlu0 %v401
    %v403 = vpop.xlane.xlu0 %402
    %v404 = vrcp.pop %v400
    %v405 = vmul.f32 %v400, %v404
    %v406 = vsub.f32 1.0, %v405
    %v407 = vmul.f32 %v404, %v406
    %v408 = vadd.f32 %v404, %v407
    %vm409 = vweird.f32 %v400
    %vm410 = vweird.f32 %v404
    %vm411 = vmor %vm409, %vm410
    %v412 = vsel %vm411, %v404, %v408
    %v413 = vand.u32 2147483647, %v400
    %vm414 = vcmp.eq.f32.partialorder %v413, 8.507059e+37
    %v415 = vand.u32 %v400, 2147483648
    %v416 = vor.u32 1.1754944e-38, %v415
    %v417 = vsel %vm414, %v416, %v412
    %v418 = vmul.f32 %v395, %v417
    %v419 = vrcp.pop %v403
    %v420 = vmul.f32 %v403, %v419
    %v421 = vsub.f32 1.0, %v420
    %v422 = vmul.f32 %v419, %v421
    %v423 = vadd.f32 %v419, %v422
    %vm424 = vweird.f32 %v403
    %vm425 = vweird.f32 %v419
    %vm426 = vmor %vm424, %vm425
    %v427 = vsel %vm426, %v419, %v423
    %v428 = vand.u32 2147483647, %v403
    %vm429 = vcmp.eq.f32.partialorder %v428, 8.507059e+37
    %v430 = vand.u32 %v403, 2147483648
    %v431 = vor.u32 1.1754944e-38, %v430
    %v432 = vsel %vm429, %v431, %v427
    %v433 = vmul.f32 %v397, %v432
    %434 = vrot.lane.b32.xlu0 %v98, 48
    %v435 = vpop.permute.xlu0 %434
    %436 = vrot.lane.b32.xlu0 %v101, 48
    %v437 = vpop.permute.xlu0 %436
    %v441 = vsel %vm141, %v418, 0
    %v444 = vsel %vm141, %v433, 0
    %446 = vmatpush.msra.mxu0 0.0
    %447 = vmatpush.msra.mxu0 0.0
    %448 = vmatpush.msra.mxu0 0.0
    %449 = vmatpush.msra.mxu0 0.0
    %450 = vmatpush.msra.mxu0 0.0
    %451 = vmatpush.msra.mxu0 0.0
    %452 = vmatpush.msra.mxu0 0.0
    %453 = vmatpush.msra.mxu0 0.0
    %454 = vmatpush.msra.mxu0 0.0
    %455 = vmatpush.msra.mxu0 0.0
    %456 = vmatpush.msra.mxu0 0.0
    %457 = vmatpush.msra.mxu0 0.0
    %458 = vmatpush.msra.mxu0 0.0
    %459 = vmatpush.msra.mxu0 0.0
    %460 = vmatpush.msra.mxu0 %v437
    %461 = vmatpush.msra.mxu0 %v435
    %462 = vmatmul.f32.gmra.mxu0 %v441
    %v463 = vpop.f32.mrf.mxu0
    %v464 = vadd.f32 0.0, %v463
    %465 = vmatmul.f32.gmra.mxu0 %v444
    %v466 = vpop.f32.mrf.mxu0
    %v467 = vadd.f32 0.0, %v466
    %468 = vdwg.mxu0
    %469 = vrot.lane.b32.xlu0 %v98, 104
    %v470 = vpop.permute.xlu0 %469
    %471 = vrot.lane.b32.xlu0 %v101, 104
    %v472 = vpop.permute.xlu0 %471
    %473 = vrot.lane.b32.xlu0 %v98, 72
    %v474 = vpop.permute.xlu0 %473
    %475 = vrot.lane.b32.xlu0 %v101, 72
    %v476 = vpop.permute.xlu0 %475
    %v477 = vsel %vm109, %v470, 0
    %v479 = vsel %vm109, %v472, 0
    %v481 = vsel %vm109, %v474, 0
    %v483 = vsel %vm109, %v476, 0
    %485 = vmatpush.xpose.msra.mxu0 0.0
    %486 = vmatpush.xpose.msra.mxu0 0.0
    %487 = vmatpush.xpose.msra.mxu0 0.0
    %488 = vmatpush.xpose.msra.mxu0 0.0
    %489 = vmatpush.xpose.msra.mxu0 0.0
    %490 = vmatpush.xpose.msra.mxu0 0.0
    %491 = vmatpush.xpose.msra.mxu0 0.0
    %492 = vmatpush.xpose.msra.mxu0 0.0
    %493 = vmatpush.xpose.msra.mxu0 0.0
    %494 = vmatpush.xpose.msra.mxu0 0.0
    %495 = vmatpush.xpose.msra.mxu0 0.0
    %496 = vmatpush.xpose.msra.mxu0 0.0
    %497 = vmatpush.xpose.msra.mxu0 0.0
    %498 = vmatpush.xpose.msra.mxu0 0.0
    %499 = vmatpush.xpose.msra.mxu0 %v483
    %500 = vmatpush.xpose.msra.mxu0 %v481
    %501 = vmatmul.f32.gmra.mxu0 %v477
    %v502 = vpop.f32.mrf.mxu0
    %v503 = vadd.f32 %v66, %v502
    %504 = vmatmul.f32.gmra.mxu0 %v479
    %v505 = vpop.f32.mrf.mxu0
    %v506 = vadd.f32 %v67, %v505
    %507 = vdwg.mxu0
    %v508 = vsel %vm141, %v503, -inf
    %509 = vmax.xlane.f32.xlu0 %v508
    %v510 = vpop.xlane.xlu0 %509
    %v511 = vsel %vm141, %v506, -inf
    %512 = vmax.xlane.f32.xlu0 %v511
    %v513 = vpop.xlane.xlu0 %512
    %v514 = vsub.f32 %v503, %v510
    %v515 = vsub.f32 %v506, %v513
    %v516 = vmul.f32 %v514, 1.442695
    %v517 = vpow.pop %v516
    %v518 = vmul.f32 %v515, 1.442695
    %v519 = vpow.pop %v518
    %v520 = vsel %vm141, %v517, 0.0
    %521 = vadd.xlane.f32.xlu0 %v520
    %v522 = vpop.xlane.xlu0 %521
    %v523 = vsel %vm141, %v519, 0.0
    %524 = vadd.xlane.f32.xlu0 %v523
    %v525 = vpop.xlane.xlu0 %524
    %v526 = vrcp.pop %v522
    %v527 = vmul.f32 %v522, %v526
    %v528 = vsub.f32 1.0, %v527
    %v529 = vmul.f32 %v526, %v528
    %v530 = vadd.f32 %v526, %v529
    %vm531 = vweird.f32 %v522
    %vm532 = vweird.f32 %v526
    %vm533 = vmor %vm531, %vm532
    %v534 = vsel %vm533, %v526, %v530
    %v535 = vand.u32 2147483647, %v522
    %vm536 = vcmp.eq.f32.partialorder %v535, 8.507059e+37
    %v537 = vand.u32 %v522, 2147483648
    %v538 = vor.u32 1.1754944e-38, %v537
    %v539 = vsel %vm536, %v538, %v534
    %v540 = vmul.f32 %v517, %v539
    %v541 = vrcp.pop %v525
    %v542 = vmul.f32 %v525, %v541
    %v543 = vsub.f32 1.0, %v542
    %v544 = vmul.f32 %v541, %v543
    %v545 = vadd.f32 %v541, %v544
    %vm546 = vweird.f32 %v525
    %vm547 = vweird.f32 %v541
    %vm548 = vmor %vm546, %vm547
    %v549 = vsel %vm548, %v541, %v545
    %v550 = vand.u32 2147483647, %v525
    %vm551 = vcmp.eq.f32.partialorder %v550, 8.507059e+37
    %v552 = vand.u32 %v525, 2147483648
    %v553 = vor.u32 1.1754944e-38, %v552
    %v554 = vsel %vm551, %v553, %v549
    %v555 = vmul.f32 %v519, %v554
    %556 = vrot.lane.b32.xlu0 %v98, 40
    %v557 = vpop.permute.xlu0 %556
    %558 = vrot.lane.b32.xlu0 %v101, 40
    %v559 = vpop.permute.xlu0 %558
    %v563 = vsel %vm141, %v540, 0
    %v566 = vsel %vm141, %v555, 0
    %568 = vmatpush.msra.mxu0 0.0
    %569 = vmatpush.msra.mxu0 0.0
    %570 = vmatpush.msra.mxu0 0.0
    %571 = vmatpush.msra.mxu0 0.0
    %572 = vmatpush.msra.mxu0 0.0
    %573 = vmatpush.msra.mxu0 0.0
    %574 = vmatpush.msra.mxu0 0.0
    %575 = vmatpush.msra.mxu0 0.0
    %576 = vmatpush.msra.mxu0 0.0
    %577 = vmatpush.msra.mxu0 0.0
    %578 = vmatpush.msra.mxu0 0.0
    %579 = vmatpush.msra.mxu0 0.0
    %580 = vmatpush.msra.mxu0 0.0
    %581 = vmatpush.msra.mxu0 0.0
    %582 = vmatpush.msra.mxu0 %v559
    %583 = vmatpush.msra.mxu0 %v557
    %584 = vmatmul.f32.gmra.mxu0 %v563
    %v585 = vpop.f32.mrf.mxu0
    %v586 = vadd.f32 0.0, %v585
    %587 = vmatmul.f32.gmra.mxu0 %v566
    %v588 = vpop.f32.mrf.mxu0
    %v589 = vadd.f32 0.0, %v588
    %590 = vdwg.mxu0
    %593 = vrot.lane.b32.xlu0 %v342, 8
    %v594 = vpop.permute.xlu0 %593
    %595 = vrot.lane.b32.xlu0 %v345, 8
    %v596 = vpop.permute.xlu0 %595
    %601 = vrot.lane.b32.xlu0 %v464, 16
    %v602 = vpop.permute.xlu0 %601
    %603 = vrot.lane.b32.xlu0 %v467, 16
    %v604 = vpop.permute.xlu0 %603
    %609 = vrot.lane.b32.xlu0 %v586, 24
    %v610 = vpop.permute.xlu0 %609
    %611 = vrot.lane.b32.xlu0 %v589, 24
    %v612 = vpop.permute.xlu0 %611
    %v615 = vsel %vm109, %v220, %v594
    %v616 = vsel %vm109, %v223, %v596
    %v617 = vsel %vm141, %v615, %v602
    %v618 = vsel %vm141, %v616, %v604
    %vm619 = vcmask 195584
    %v620 = vsel %vm619, %v617, %v610
    %v621 = vsel %vm619, %v618, %v612
    %v622 = vld [vmem:[%s2] sm:$0xff]
    %v623 = vld [vmem:[%s2 + $0x8] sm:$0xff]
    %v624 = vld [vmem:[%s2 + $0x10] sm:$0xff]
    %v625 = vld [vmem:[%s2 + $0x18] sm:$0xff]
    %v626 = vperm.slane %v59, 0
    %v628 = vsel %vm73, %v620, 0
    %v631 = vsel %vm73, %v621, 0
    %633 = vmatpush.msra.mxu0 0.0
    %634 = vmatpush.msra.mxu0 0.0
    %635 = vmatpush.msra.mxu0 0.0
    %636 = vmatpush.msra.mxu0 0.0
    %637 = vmatpush.msra.mxu0 0.0
    %638 = vmatpush.msra.mxu0 0.0
    %639 = vmatpush.msra.mxu0 0.0
    %640 = vmatpush.msra.mxu0 0.0
    %641 = vmatpush.msra.mxu0 0.0
    %642 = vmatpush.msra.mxu0 0.0
    %643 = vmatpush.msra.mxu0 0.0
    %644 = vmatpush.msra.mxu0 0.0
    %645 = vmatpush.msra.mxu0 %v625
    %646 = vmatpush.msra.mxu0 %v624
    %647 = vmatpush.msra.mxu0 %v623
    %648 = vmatpush.msra.mxu0 %v622
    %649 = vmatmul.f32.gmra.mxu0 %v628
    %v650 = vpop.f32.mrf.mxu0
    %v651 = vadd.f32 %v626, %v650
    %652 = vmatmul.f32.gmra.mxu0 %v631
    %v653 = vpop.f32.mrf.mxu0
    %v654 = vadd.f32 %v626, %v653
    %655 = vdwg.mxu0
    %v656 = vadd.f32 %v56, %v651
    %v657 = vadd.f32 %v57, %v654
    %v658 = vsel %vm73, %v656, 0.0
    %659 = vadd.xlane.f32.xlu0 %v658
    %v660 = vpop.xlane.xlu0 %659
    %v661 = vsel %vm73, %v657, 0.0
    %662 = vadd.xlane.f32.xlu0 %v661
    %v663 = vpop.xlane.xlu0 %662
    %v664 = vrcp.pop 32.0
    %v665 = vmul.f32 32.0, %v664
    %v666 = vsub.f32 1.0, %v665
    %v667 = vmul.f32 %v664, %v666
    %v668 = vadd.f32 %v664, %v667
    %vm669 = vweird.f32 %v664
    %v670 = vsel %vm669, %v664, %v668
    %v671 = vmul.f32 %v660, %v670
    %v672 = vmul.f32 %v663, %v670
    %v673 = vsub.f32 %v656, %v671
    %v674 = vsub.f32 %v657, %v672
    %v675 = vmul.f32 %v673, %v673
    %v676 = vmul.f32 %v674, %v674
    %v677 = vsel %vm73, %v675, 0.0
    %678 = vadd.xlane.f32.xlu0 %v677
    %v679 = vpop.xlane.xlu0 %678
    %v680 = vsel %vm73, %v676, 0.0
    %681 = vadd.xlane.f32.xlu0 %v680
    %v682 = vpop.xlane.xlu0 %681
    %v683 = vmul.f32 %v679, %v670
    %v684 = vmul.f32 %v682, %v670
    %v685 = vadd.f32 %v683, 1e-12
    %v686 = vadd.f32 %v684, 1e-12
    %v687 = vrsqrt.pop %v685
    %v688 = vmul.f32 %v687, %v685
    %v689 = vmul.f32 %v688, %v687
    %v690 = vmul.f32 0.5, %v689
    %v691 = vsub.f32 1.5, %v690
    %v692 = vmul.f32 %v687, %v691
    %vm693 = vweird.f32 %v685
    %vm694 = vweird.f32 %v687
    %vm695 = vmor %vm693, %vm694
    %v696 = vsel %vm695, %v687, %v692
    %v697 = vrsqrt.pop %v686
    %v698 = vmul.f32 %v697, %v686
    %v699 = vmul.f32 %v698, %v697
    %v700 = vmul.f32 0.5, %v699
    %v701 = vsub.f32 1.5, %v700
    %v702 = vmul.f32 %v697, %v701
    %vm703 = vweird.f32 %v686
    %vm704 = vweird.f32 %v697
    %vm705 = vmor %vm703, %vm704
    %v706 = vsel %vm705, %v697, %v702
    %v707 = vmul.f32 %v673, %v696
    %v708 = vmul.f32 %v674, %v706
    %v709 = vperm.slane %v60, 0
    %v710 = vmul.f32 %v707, %v709
    %v711 = vmul.f32 %v708, %v709
    %v712 = vperm.slane %v61, 0
    %v713 = vadd.f32 %v710, %v712
    %v714 = vadd.f32 %v711, %v712
    %v715 = vld [vmem:[%s3] sm:$0xff]
    %v716 = vld [vmem:[%s3 + $0x8] sm:$0xff]
    %v717 = vld [vmem:[%s3 + $0x10] sm:$0xff]
    %v718 = vld [vmem:[%s3 + $0x18] sm:$0xff]
    %v719 = vperm.slane %v62, 0
    %v721 = vsel %vm73, %v713, 0
    %v724 = vsel %vm73, %v714, 0
    %726 = vmatpush.msra.mxu0 0.0
    %727 = vmatpush.msra.mxu0 0.0
    %728 = vmatpush.msra.mxu0 0.0
    %729 = vmatpush.msra.mxu0 0.0
    %730 = vmatpush.msra.mxu0 0.0
    %731 = vmatpush.msra.mxu0 0.0
    %732 = vmatpush.msra.mxu0 0.0
    %733 = vmatpush.msra.mxu0 0.0
    %734 = vmatpush.msra.mxu0 0.0
    %735 = vmatpush.msra.mxu0 0.0
    %736 = vmatpush.msra.mxu0 0.0
    %737 = vmatpush.msra.mxu0 0.0
    %738 = vmatpush.msra.mxu0 %v718
    %739 = vmatpush.msra.mxu0 %v717
    %740 = vmatpush.msra.mxu0 %v716
    %741 = vmatpush.msra.mxu0 %v715
    %742 = vmatmul.f32.gmra.mxu0 %v721
    %v743 = vpop.f32.mrf.mxu0
    %v744 = vadd.f32 %v719, %v743
    %745 = vmatmul.f32.gmra.mxu0 %v724
    %v746 = vpop.f32.mrf.mxu0
    %v747 = vadd.f32 %v719, %v746
    %748 = vdwg.mxu0
    %v749 = vmul.f32 %v744, 0.5
    %v750 = vmul.f32 %v747, 0.5
    %v751 = vrcp.pop 1.4142135
    %v752 = vmul.f32 1.4142135, %v751
    %v753 = vsub.f32 1.0, %v752
    %v754 = vmul.f32 %v751, %v753
    %v755 = vadd.f32 %v751, %v754
    %vm756 = vweird.f32 %v751
    %v757 = vsel %vm756, %v751, %v755
    %v758 = vmul.f32 %v744, %v757
    %v759 = vmul.f32 %v747, %v757
    %v760 = vmul.f32 %v758, %v758
    %v761 = vmin.f32 16.0, %v760
    %v762 = vmul.f32 %v761, 2.1237322e-06
    %v763 = vadd.f32 %v762, 0.00028619796
    %v764 = vmul.f32 %v761, %v763
    %v765 = vadd.f32 %v764, 0.0036580483
    %v766 = vmul.f32 %v761, %v765
    %v767 = vadd.f32 %v766, 0.05243302
    %v768 = vmul.f32 %v761, %v767
    %v769 = vadd.f32 %v768, 0.18741608
    %v770 = vmul.f32 %v761, %v769
    %v771 = vadd.f32 %v770, 1.1283791
    %v772 = vmul.f32 %v758, %v771
    %v773 = vmul.f32 %v761, 3.8918573e-05
    %v774 = vadd.f32 %v773, 0.001143296
    %v775 = vmul.f32 %v761, %v774
    %v776 = vadd.f32 %v775, 0.014752088
    %v777 = vmul.f32 %v761, %v776
    %v778 = vadd.f32 %v777, 0.112945676
    %v779 = vmul.f32 %v761, %v778
    %v780 = vadd.f32 %v779, 0.4994258
    %v781 = vmul.f32 %v761, %v780
    %v782 = vadd.f32 %v781, 1.0
    %v783 = vrcp.pop %v782
    %v784 = vmul.f32 %v782, %v783
    %v785 = vsub.f32 1.0, %v784
    %v786 = vmul.f32 %v783, %v785
    %v787 = vadd.f32 %v783, %v786
    %vm788 = vweird.f32 %v782
    %vm789 = vweird.f32 %v783
    %vm790 = vmor %vm788, %vm789
    %v791 = vsel %vm790, %v783, %v787
    %v792 = vand.u32 2147483647, %v782
    %vm793 = vcmp.eq.f32.partialorder %v792, 8.507059e+37
    %v794 = vand.u32 %v782, 2147483648
    %v795 = vor.u32 1.1754944e-38, %v794
    %v796 = vsel %vm793, %v795, %v791
    %v797 = vmul.f32 %v772, %v796
    %v798 = vmin.f32 %v797, 1.0
    %v799 = vmax.f32 %v798, -1.0
    %v800 = vmul.f32 %v759, %v759
    %v801 = vmin.f32 16.0, %v800
    %v802 = vmul.f32 %v801, 2.1237322e-06
    %v803 = vadd.f32 %v802, 0.00028619796
    %v804 = vmul.f32 %v801, %v803
    %v805 = vadd.f32 %v804, 0.0036580483
    %v806 = vmul.f32 %v801, %v805
    %v807 = vadd.f32 %v806, 0.05243302
    %v808 = vmul.f32 %v801, %v807
    %v809 = vadd.f32 %v808, 0.18741608
    %v810 = vmul.f32 %v801, %v809
    %v811 = vadd.f32 %v810, 1.1283791
    %v812 = vmul.f32 %v759, %v811
    %v813 = vmul.f32 %v801, 3.8918573e-05
    %v814 = vadd.f32 %v813, 0.001143296
    %v815 = vmul.f32 %v801, %v814
    %v816 = vadd.f32 %v815, 0.014752088
    %v817 = vmul.f32 %v801, %v816
    %v818 = vadd.f32 %v817, 0.112945676
    %v819 = vmul.f32 %v801, %v818
    %v820 = vadd.f32 %v819, 0.4994258
    %v821 = vmul.f32 %v801, %v820
    %v822 = vadd.f32 %v821, 1.0
    %v823 = vrcp.pop %v822
    %v824 = vmul.f32 %v822, %v823
    %v825 = vsub.f32 1.0, %v824
    %v826 = vmul.f32 %v823, %v825
    %v827 = vadd.f32 %v823, %v826
    %vm828 = vweird.f32 %v822
    %vm829 = vweird.f32 %v823
    %vm830 = vmor %vm828, %vm829
    %v831 = vsel %vm830, %v823, %v827
    %v832 = vand.u32 2147483647, %v822
    %vm833 = vcmp.eq.f32.partialorder %v832, 8.507059e+37
    %v834 = vand.u32 %v822, 2147483648
    %v835 = vor.u32 1.1754944e-38, %v834
    %v836 = vsel %vm833, %v835, %v831
    %v837 = vmul.f32 %v812, %v836
    %v838 = vmin.f32 %v837, 1.0
    %v839 = vmax.f32 %v838, -1.0
    %v840 = vadd.f32 %v799, 1.0
    %v841 = vadd.f32 %v839, 1.0
    %v842 = vmul.f32 %v749, %v840
    %v843 = vmul.f32 %v750, %v841
    %v844 = vld [vmem:[%s4] sm:$0xff]
    %v845 = vld [vmem:[%s4 + $0x8] sm:$0xff]
    %v846 = vld [vmem:[%s4 + $0x10] sm:$0xff]
    %v847 = vld [vmem:[%s4 + $0x18] sm:$0xff]
    %v848 = vld [vmem:[%s4 + $0x20] sm:$0xff]
    %v849 = vld [vmem:[%s4 + $0x28] sm:$0xff]
    %v850 = vld [vmem:[%s4 + $0x30] sm:$0xff]
    %v851 = vld [vmem:[%s4 + $0x38] sm:$0xff]
    %v852 = vperm.slane %v63, 0
    %vm853 = vcmask 523264
    %v855 = vsel %vm853, %v842, 0
    %v858 = vsel %vm853, %v843, 0
    %860 = vmatpush.msra.mxu0 0.0
    %861 = vmatpush.msra.mxu0 0.0
    %862 = vmatpush.msra.mxu0 0.0
    %863 = vmatpush.msra.mxu0 0.0
    %864 = vmatpush.msra.mxu0 0.0
    %865 = vmatpush.msra.mxu0 0.0
    %866 = vmatpush.msra.mxu0 0.0
    %867 = vmatpush.msra.mxu0 0.0
    %868 = vmatpush.msra.mxu0 %v851
    %869 = vmatpush.msra.mxu0 %v850
    %870 = vmatpush.msra.mxu0 %v849
    %871 = vmatpush.msra.mxu0 %v848
    %872 = vmatpush.msra.mxu0 %v847
    %873 = vmatpush.msra.mxu0 %v846
    %874 = vmatpush.msra.mxu0 %v845
    %875 = vmatpush.msra.mxu0 %v844
    %876 = vmatmul.f32.gmra.mxu0 %v855
    %v877 = vpop.f32.mrf.mxu0
    %v878 = vadd.f32 %v852, %v877
    %879 = vmatmul.f32.gmra.mxu0 %v858
    %v880 = vpop.f32.mrf.mxu0
    %v881 = vadd.f32 %v852, %v880
    %882 = vdwg.mxu0
    %v883 = vadd.f32 %v878, %v713
    %v884 = vadd.f32 %v881, %v714
    %v885 = vsel %vm73, %v883, 0.0
    %886 = vadd.xlane.f32.xlu0 %v885
    %v887 = vpop.xlane.xlu0 %886
    %v888 = vsel %vm73, %v884, 0.0
    %889 = vadd.xlane.f32.xlu0 %v888
    %v890 = vpop.xlane.xlu0 %889
    %v891 = vmul.f32 %v887, %v670
    %v892 = vmul.f32 %v890, %v670
    %v893 = vsub.f32 %v883, %v891
    %v894 = vsub.f32 %v884, %v892
    %v895 = vmul.f32 %v893, %v893
    %v896 = vmul.f32 %v894, %v894
    %v897 = vsel %vm73, %v895, 0.0
    %898 = vadd.xlane.f32.xlu0 %v897
    %v899 = vpop.xlane.xlu0 %898
    %v900 = vsel %vm73, %v896, 0.0
    %901 = vadd.xlane.f32.xlu0 %v900
    %v902 = vpop.xlane.xlu0 %901
    %v903 = vmul.f32 %v899, %v670
    %v904 = vmul.f32 %v902, %v670
    %v905 = vadd.f32 %v903, 1e-12
    %v906 = vadd.f32 %v904, 1e-12
    %v907 = vrsqrt.pop %v905
    %v908 = vmul.f32 %v907, %v905
    %v909 = vmul.f32 %v908, %v907
    %v910 = vmul.f32 0.5, %v909
    %v911 = vsub.f32 1.5, %v910
    %v912 = vmul.f32 %v907, %v911
    %vm913 = vweird.f32 %v905
    %vm914 = vweird.f32 %v907
    %vm915 = vmor %vm913, %vm914
    %v916 = vsel %vm915, %v907, %v912
    %v917 = vrsqrt.pop %v906
    %v918 = vmul.f32 %v917, %v906
    %v919 = vmul.f32 %v918, %v917
    %v920 = vmul.f32 0.5, %v919
    %v921 = vsub.f32 1.5, %v920
    %v922 = vmul.f32 %v917, %v921
    %vm923 = vweird.f32 %v906
    %vm924 = vweird.f32 %v917
    %vm925 = vmor %vm923, %vm924
    %v926 = vsel %vm925, %v917, %v922
    %v927 = vmul.f32 %v893, %v916
    %v928 = vmul.f32 %v894, %v926
    %v929 = vperm.slane %v64, 0
    %v930 = vmul.f32 %v927, %v929
    %v931 = vmul.f32 %v928, %v929
    %v932 = vperm.slane %v65, 0
    %v933 = vadd.f32 %v930, %v932
    %v934 = vadd.f32 %v931, %v932
    %935 = vst.msk [vmem:[#allocation7] sm:$0xff] %vm73, %v933
    %936 = vst.msk [vmem:[#allocation7 + $0x8] sm:$0xff] %vm73, %v934
    // Predicated region
    $region34: #{albert_layer.1} parent=1 // pred_check
      _
    $region35: #{albert_layer.1} parent=1 // pred_check_branch
      %938 = sbr.rel (0) target = $region37
    $region36: #{albert_layer.1} parent=1 // pred_region
      %940 = vsyncadd [#allocation4], 0
      %s941 = sshll.u32 [#allocation7], 4
      %s942 = int_to_ptr.vmem [resolvable:$true] %s941
      %s943 = sshll.u32 %s6, 4
      %s944 = int_to_ptr.hbm [resolvable:$true] %s943
      %949 = dma.vmem_to_hbm [thread:$0]  %s942, 256, %s944, [#allocation4], 128, 128, 8
    $region37: #{albert_layer.1} parent=1 // pred_fallthru
      _
    // Predicated region
    $region38: #{albert_layer.1} parent=1 // pred_check
      _
    $region39: #{albert_layer.1} parent=1 // pred_check_branch
      %951 = sbr.rel (0) target = $region41
    $region40: #{albert_layer.1} parent=1 // pred_region
      %953 = dma.done [#allocation4], 256
    $region41: #{albert_layer.1} parent=1 // pred_fallthru
      _
    %954 = vsyncpa [#allocation3], 1
    %955 = vsyncpa [#allocation6], 1
    %956 = vsyncpa [#allocation4], 1

</llo_original>
